<compile_context>
chip_gen: v5e
topology: v5e:2x2
jax: 0.10.0
libtpu: 0.0.40
codegen_flags: <defaults>
</compile_context>

<pallas_src>
import math

import jax
import jax.numpy as jnp
from jax import lax
from jax.experimental import pallas as pl
from jax.experimental.pallas import tpu as pltpu

LN_EPS = 1e-5


def _guide_block_kernel(q_ref, k_ref, v_ref,
                        woT_ref, bo_ref, wmT_ref, bm_ref,
                        gamma_ref, beta_ref,
                        newq_ref, newk_ref, attn_ref):
    """One grid step == one block of Bb batch elements.

    Block shapes seen by the kernel:
      q_ref    : (Bb, Lq, H)
      k_ref    : (Bb, Lk, H)
      v_ref    : (Bb, Lk, H)
      woT_ref  : (H, H)   -- W_observer^T (pre-transposed in the wrapper)
      wmT_ref  : (H, H)   -- W_matrix^T
      bo_ref, bm_ref, gamma_ref, beta_ref : (1, H)
      newq_ref : (Bb, Lq, H)   newk_ref : (Bb, Lk, H)
      attn_ref : (Bb, Lq, Lk)  or lane-dense (Bb, Lq*Lk)
    """
    H = q_ref.shape[-1]
    inv_sqrt_dim = 1.0 / math.sqrt(H)

    q = q_ref[...]            # (Bb, Lq, H), input dtype (no upcast)
    k = k_ref[...]            # (Bb, Lk, H)
    v = v_ref[...]            # (Bb, Lk, H)

    # --- ScaledDotProductAttention --------------------------------------
    # Fold 1/sqrt(H) into q; weak-typed scalar mul keeps q's dtype.
    q_scaled = q * inv_sqrt_dim

    # score[b, i, j] = sum_h q_scaled[b, i, h] * k[b, j, h]
    # (batched contraction on the MXU; no k^T materialized in VMEM)
    score = lax.dot_general(
        q_scaled, k,
        dimension_numbers=(((2,), (2,)), ((0,), (0,))),
        preferred_element_type=jnp.float32)              # (Bb, Lq, Lk) f32

    m = jnp.max(score, axis=-1, keepdims=True)
    e = jnp.exp(score - m)
    denom = jnp.sum(e, axis=-1, keepdims=True)           # (Bb, Lq, 1)
    # Exact reciprocal on the tiny denominator tile (the approximate EUP
    # path broke the <=2e-3 match against the PyTorch softmax reference).
    attn = e * (1.0 / denom)                              # (Bb, Lq, Lk) f32

    Bb, Lq, Lk = attn.shape
    if len(attn_ref.shape) == 2:
        # Lane-dense flattened layout chosen by the wrapper when Lk < 128.
        attn_ref[...] = attn.reshape(Bb, Lq * Lk).astype(attn_ref.dtype)
    else:
        attn_ref[...] = attn.astype(attn_ref.dtype)

    context = lax.dot_general(
        attn.astype(v.dtype), v,
        dimension_numbers=(((2,), (1,)), ((0,), (0,))),
        preferred_element_type=jnp.float32)               # (Bb, Lq, H) f32

    # --- Linear -> ReLU -> LayerNorm (shared LN affine) ------------------
    gamma = gamma_ref[...].astype(jnp.float32)            # (1, H)
    beta = beta_ref[...].astype(jnp.float32)              # (1, H)

    def linear_relu_layernorm(x3, wT_ref, b_ref):
        # x3: (Bb, L, H).  nn.Linear computes x @ W^T; wT is already W^T.
        Bb_, L, Hh = x3.shape
        wT = wT_ref[...]
        b = b_ref[...].astype(jnp.float32)                # (1, H)
        if L % 8 == 0:
            # Merging (Bb, L) across the sublane dim is only a free relayout
            # when L is a multiple of the sublane tile (8).
            x2 = x3.astype(wT.dtype).reshape(Bb_ * L, Hh)
            y = jnp.dot(x2, wT, preferred_element_type=jnp.float32)
        else:
            # Fallback: per-batch 2-D matmuls, no cross-tile reshape.
            y = jnp.concatenate(
                [jnp.dot(x3[i].astype(wT.dtype), wT,
                         preferred_element_type=jnp.float32)
                 for i in range(Bb_)], axis=0)
        y = jnp.maximum(y + b, 0.0)                       # bias + ReLU
        # Fused one-pass LayerNorm statistics: var = E[y^2] - mean^2.
        mean = jnp.mean(y, axis=-1, keepdims=True)
        mean_sq = jnp.mean(y * y, axis=-1, keepdims=True)
        var = jnp.maximum(mean_sq - mean * mean, 0.0)     # biased variance
        y_hat = (y - mean) * lax.rsqrt(var + LN_EPS)
        out = y_hat * gamma + beta                        # LayerNorm affine
        return out.reshape(Bb_, L, Hh)

    new_query = linear_relu_layernorm(context, woT_ref, bo_ref)   # (Bb, Lq, H)
    new_key = linear_relu_layernorm(k, wmT_ref, bm_ref)           # (Bb, Lk, H)

    newq_ref[...] = new_query.astype(newq_ref.dtype)
    newk_ref[...] = new_key.astype(newk_ref.dtype)


def _vmem_limit_bytes():
    """Generation-aware scoped-VMEM request with headroom for Pallas'
    double-buffers / internal scratch (~0.78x physical)."""
    try:
        cap = int(pltpu.get_tpu_info().vmem_capacity_bytes)
    except Exception:
        cap = 64 * 1024 * 1024   # conservative: v7x per-TensorCore VMEM
    return max(16 * 1024 * 1024, int(cap * 0.78))


def _per_step_vmem_bytes(Bb, Lq, Lk, H, in_bytes, out_bytes):
    """Explicit per-grid-step VMEM footprint estimate."""
    f32 = 4
    # Double-buffered pipelined I/O blocks (Pallas allocates 2x each).
    io = 2 * (Bb * Lq * H + 2 * Bb * Lk * H) * in_bytes              # q, k, v
    io += 2 * (Bb * Lq * H + Bb * Lk * H + Bb * Lq * Lk) * out_bytes  # outputs
    # Grid-invariant params (weights + 4 bias/affine rows), also 2x-buffered.
    io += 2 * (2 * H * H + 4 * H) * in_bytes
    # f32 intermediates live inside the body.
    body = 3 * Bb * Lq * Lk * f32                      # score / e / attn
    body += Bb * Lq * H * f32                          # context
    body += 2 * (Bb * Lq * H + Bb * Lk * H) * f32      # y tiles + LN temps
    return int((io + body) * 1.2)                      # 20% Mosaic-scratch fudge


def _pick_batch_block(B, Lq, Lk, H, in_bytes, out_bytes, vmem_budget):
    """Largest divisor Bb of B whose per-step footprint fits the VMEM budget.
    Bigger blocks amortize the ~0.35 us/step overhead and keep the MXU fed
    with back-to-back batched matmuls."""
    best = 1
    for bb in range(1, B + 1):
        if B % bb != 0:
            continue
        if _per_step_vmem_bytes(bb, Lq, Lk, H, in_bytes, out_bytes) <= vmem_budget:
            best = bb
    return best


def guide_block(query, key, value, wo, bo, wm, bm, gamma, beta):
    """JAX wrapper reproducing Guide_Block.forward (dropout == identity)."""
    B, Lk, H = key.shape
    query_ = query[:B]                       # query[:key.size(0), :, :]
    Lq = query_.shape[1]

    # Grid-invariant parameter prep — done once in XLA, not per grid step.
    woT = wo.T                               # nn.Linear computes x @ W^T
    wmT = wm.T
    bo2 = bo.reshape(1, H)
    bm2 = bm.reshape(1, H)
    gamma2 = gamma.reshape(1, H)
    beta2 = beta.reshape(1, H)

    in_bytes = jnp.dtype(query.dtype).itemsize
    out_bytes = in_bytes                     # outputs keep the input dtype
    vmem_limit = _vmem_limit_bytes()
    Bb = _pick_batch_block(B, Lq, Lk, H, in_bytes, out_bytes, vmem_limit)
    grid = (B // Bb,)

    # Lane-dense attention output when Lk < 128 (avoids masked vst.msk
    # partial stores).  Only legal when Bb covers B or is sublane-aligned.
    flatten_attn = Lk < 128 and (Bb == B or Bb % 8 == 0)
    if flatten_attn:
        attn_shape = (B, Lq * Lk)
        attn_block = (Bb, Lq * Lk)
        attn_map = lambda b: (b, 0)
    else:
        attn_shape = (B, Lq, Lk)
        attn_block = (Bb, Lq, Lk)
        attn_map = lambda b: (b, 0, 0)

    out_shapes = (
        jax.ShapeDtypeStruct((B, Lq, H), query.dtype),   # new_query_vec
        jax.ShapeDtypeStruct((B, Lk, H), key.dtype),     # new_key_matrix
        jax.ShapeDtypeStruct(attn_shape, query.dtype),   # att_weight
    )

    grid_spec = pltpu.PrefetchScalarGridSpec(
        num_scalar_prefetch=0,
        grid=grid,
        in_specs=[
            pl.BlockSpec((Bb, Lq, H), lambda b: (b, 0, 0)),   # query_
            pl.BlockSpec((Bb, Lk, H), lambda b: (b, 0, 0)),   # key
            pl.BlockSpec((Bb, Lk, H), lambda b: (b, 0, 0)),   # value
            pl.BlockSpec((H, H), lambda b: (0, 0)),           # W_observer^T
            pl.BlockSpec((1, H), lambda b: (0, 0)),           # b_observer
            pl.BlockSpec((H, H), lambda b: (0, 0)),           # W_matrix^T
            pl.BlockSpec((1, H), lambda b: (0, 0)),           # b_matrix
            pl.BlockSpec((1, H), lambda b: (0, 0)),           # ln gamma
            pl.BlockSpec((1, H), lambda b: (0, 0)),           # ln beta
        ],
        out_specs=[
            pl.BlockSpec((Bb, Lq, H), lambda b: (b, 0, 0)),
            pl.BlockSpec((Bb, Lk, H), lambda b: (b, 0, 0)),
            pl.BlockSpec(attn_block, attn_map),
        ],
    )

    new_q, new_k, attn = pl.pallas_call(
        _guide_block_kernel,
        out_shape=out_shapes,
        grid_spec=grid_spec,
        compiler_params=pltpu.CompilerParams(
            dimension_semantics=("parallel",),
            vmem_limit_bytes=vmem_limit),
    )(query_, key, value, woT, bo2, wmT, bm2, gamma2, beta2)

    if flatten_attn:
        attn = attn.reshape(B, Lq, Lk)
    return new_q, new_k, attn


def _reference(query, key, value, wo, bo, wm, bm, gamma, beta):
    """Pure-JAX reference of Guide_Block.forward (eval mode)."""
    B, Lk, H = key.shape
    q = query[:B]
    score = jnp.einsum("bqh,bkh->bqk", q, key,
                       precision="highest") / math.sqrt(H)
    attn = jax.nn.softmax(score, axis=-1)
    context = jnp.einsum("bqk,bkh->bqh", attn, value, precision="highest")

    def branch(x, w, b):
        y = jax.nn.relu(jnp.einsum("blh,oh->blo", x, w,
                                   precision="highest") + b)
        mean = jnp.mean(y, axis=-1, keepdims=True)
        var = jnp.mean((y - mean) ** 2, axis=-1, keepdims=True)
        return (y - mean) / jnp.sqrt(var + LN_EPS) * gamma + beta

    return branch(context, wo, bo), branch(key, wm, bm), attn


if __name__ == "__main__":
    key0 = jax.random.PRNGKey(0)
    ks = jax.random.split(key0, 11)

    B, Lq, Lk, H = 2, 8, 8, 32

    query = jax.random.normal(ks[0], (B, Lq, H), jnp.float32)
    key_t = jax.random.normal(ks[1], (B, Lk, H), jnp.float32)
    value = jax.random.normal(ks[2], (B, Lk, H), jnp.float32)

    # Deterministic parameter init (uniform like nn.Linear default scale).
    bound = 1.0 / math.sqrt(H)
    wo = jax.random.uniform(ks[3], (H, H), jnp.float32, -bound, bound)
    bo = jax.random.uniform(ks[4], (H,), jnp.float32, -bound, bound)
    wm = jax.random.uniform(ks[5], (H, H), jnp.float32, -bound, bound)
    bm = jax.random.uniform(ks[6], (H,), jnp.float32, -bound, bound)
    gamma = jax.random.uniform(ks[7], (H,), jnp.float32, 0.5, 1.5)
    beta = jax.random.uniform(ks[8], (H,), jnp.float32, -0.5, 0.5)

    new_q, new_k, attn_w = guide_block(query, key_t, value,
                                       wo, bo, wm, bm, gamma, beta)
    jax.block_until_ready((new_q, new_k, attn_w))

    rq, rk, ra = _reference(query, key_t, value, wo, bo, wm, bm, gamma, beta)
    assert jnp.allclose(new_q, rq, atol=2e-3, rtol=2e-3)
    assert jnp.allclose(new_k, rk, atol=2e-3, rtol=2e-3)
    assert jnp.allclose(attn_w, ra, atol=2e-3, rtol=2e-3)

    print("KERNEL_OK")
</pallas_src>

<mosaic_0001>
module attributes {stable_mosaic.version = 11 : i64} {
  func.func @_guide_block_kernel(%arg0: i32, %arg1: memref<2x8x32xf32, #tpu.memory_space<vmem>>, %arg2: memref<2x8x32xf32, #tpu.memory_space<vmem>>, %arg3: memref<2x8x32xf32, #tpu.memory_space<vmem>>, %arg4: memref<32x32xf32, #tpu.memory_space<vmem>>, %arg5: memref<1x32xf32, #tpu.memory_space<vmem>>, %arg6: memref<32x32xf32, #tpu.memory_space<vmem>>, %arg7: memref<1x32xf32, #tpu.memory_space<vmem>>, %arg8: memref<1x32xf32, #tpu.memory_space<vmem>>, %arg9: memref<1x32xf32, #tpu.memory_space<vmem>>, %arg10: memref<2x8x32xf32, #tpu.memory_space<vmem>>, %arg11: memref<2x8x32xf32, #tpu.memory_space<vmem>>, %arg12: memref<2x64xf32, #tpu.memory_space<vmem>>) attributes {dimension_semantics = [#tpu.dimension_semantics<parallel>], iteration_bounds = array<i64: 1>, scalar_prefetch = 0 : i64, scratch_operands = 0 : i64, tpu.core_type = #tpu.core_type<tc>, window_params = [{transform_indices = @transform_0, window_bounds = array<i64: 2, 8, 32>}, {transform_indices = @transform_1, window_bounds = array<i64: 2, 8, 32>}, {transform_indices = @transform_2, window_bounds = array<i64: 2, 8, 32>}, {pipeline_mode = #tpu.pipeline_mode<synchronous>, transform_indices = @transform_3, window_bounds = array<i64: 32, 32>}, {pipeline_mode = #tpu.pipeline_mode<synchronous>, transform_indices = @transform_4, window_bounds = array<i64: 1, 32>}, {pipeline_mode = #tpu.pipeline_mode<synchronous>, transform_indices = @transform_5, window_bounds = array<i64: 32, 32>}, {pipeline_mode = #tpu.pipeline_mode<synchronous>, transform_indices = @transform_6, window_bounds = array<i64: 1, 32>}, {pipeline_mode = #tpu.pipeline_mode<synchronous>, transform_indices = @transform_7, window_bounds = array<i64: 1, 32>}, {pipeline_mode = #tpu.pipeline_mode<synchronous>, transform_indices = @transform_8, window_bounds = array<i64: 1, 32>}, {transform_indices = @transform_9, window_bounds = array<i64: 2, 8, 32>}, {transform_indices = @transform_10, window_bounds = array<i64: 2, 8, 32>}, {transform_indices = @transform_11, window_bounds = array<i64: 2, 64>}]} {
    %c0 = arith.constant 0 : index
    %c0_0 = arith.constant 0 : index
    %c0_1 = arith.constant 0 : index
    %0 = vector.load %arg1[%c0, %c0_0, %c0_1] : memref<2x8x32xf32, #tpu.memory_space<vmem>>, vector<2x8x32xf32>
    %c0_2 = arith.constant 0 : index
    %c0_3 = arith.constant 0 : index
    %c0_4 = arith.constant 0 : index
    %1 = vector.load %arg2[%c0_2, %c0_3, %c0_4] : memref<2x8x32xf32, #tpu.memory_space<vmem>>, vector<2x8x32xf32>
    %c0_5 = arith.constant 0 : index
    %c0_6 = arith.constant 0 : index
    %c0_7 = arith.constant 0 : index
    %2 = vector.load %arg3[%c0_5, %c0_6, %c0_7] : memref<2x8x32xf32, #tpu.memory_space<vmem>>, vector<2x8x32xf32>
    %cst = arith.constant 0.176776692 : f32
    %3 = vector.broadcast %cst : f32 to vector<2x8x32xf32>
    %4 = arith.mulf %0, %3 : vector<2x8x32xf32>
    %cst_8 = arith.constant dense<0.000000e+00> : vector<2x8x8xf32>
    %5 = tpu.matmul %4, %1, %cst_8 {dimension_numbers = #tpu.dot_dimension_numbers<[2], [2], [1], [1], [0, 0, 0, 1, 1, 1], [0], [0]>} : vector<2x8x32xf32>, vector<2x8x32xf32>, vector<2x8x8xf32> -> vector<2x8x8xf32>
    %cst_9 = arith.constant dense<0xFF800000> : vector<2x8xf32>
    %6 = vector.multi_reduction <maximumf>, %5, %cst_9 [2] : vector<2x8x8xf32> to vector<2x8xf32>
    %7 = vector.shape_cast %6 : vector<2x8xf32> to vector<2x8x1xf32>
    %8 = vector.broadcast %7 : vector<2x8x1xf32> to vector<2x8x8xf32>
    %9 = arith.subf %5, %8 : vector<2x8x8xf32>
    %10 = math.exp %9 : vector<2x8x8xf32>
    %cst_10 = arith.constant dense<0.000000e+00> : vector<2x8xf32>
    %11 = vector.multi_reduction <add>, %10, %cst_10 [2] : vector<2x8x8xf32> to vector<2x8xf32>
    %12 = vector.shape_cast %11 : vector<2x8xf32> to vector<2x8x1xf32>
    %cst_11 = arith.constant 1.000000e+00 : f32
    %13 = vector.broadcast %cst_11 : f32 to vector<2x8x1xf32>
    %14 = arith.divf %13, %12 : vector<2x8x1xf32>
    %15 = vector.broadcast %14 : vector<2x8x1xf32> to vector<2x8x8xf32>
    %16 = arith.mulf %10, %15 : vector<2x8x8xf32>
    %17 = vector.shape_cast %16 : vector<2x8x8xf32> to vector<2x64xf32>
    %c0_12 = arith.constant 0 : index
    %c0_13 = arith.constant 0 : index
    %18 = vector.load %arg12[%c0_12, %c0_13] : memref<2x64xf32, #tpu.memory_space<vmem>>, vector<2x64xf32>
    tpu.vector_store %arg12[%c0_12, %c0_13], %17 {strides = array<i32>} : memref<2x64xf32, #tpu.memory_space<vmem>>, vector<2x64xf32>,
    %cst_14 = arith.constant dense<0.000000e+00> : vector<2x8x32xf32>
    %19 = tpu.matmul %16, %2, %cst_14 {dimension_numbers = #tpu.dot_dimension_numbers<[2], [1], [1], [2], [0, 0, 0, 1, 1, 2], [0], [0]>} : vector<2x8x8xf32>, vector<2x8x32xf32>, vector<2x8x32xf32> -> vector<2x8x32xf32>
    %c0_15 = arith.constant 0 : index
    %c0_16 = arith.constant 0 : index
    %20 = vector.load %arg8[%c0_15, %c0_16] : memref<1x32xf32, #tpu.memory_space<vmem>>, vector<1x32xf32>
    %c0_17 = arith.constant 0 : index
    %c0_18 = arith.constant 0 : index
    %21 = vector.load %arg9[%c0_17, %c0_18] : memref<1x32xf32, #tpu.memory_space<vmem>>, vector<1x32xf32>
    %c0_19 = arith.constant 0 : index
    %c0_20 = arith.constant 0 : index
    %22 = vector.load %arg4[%c0_19, %c0_20] : memref<32x32xf32, #tpu.memory_space<vmem>>, vector<32x32xf32>
    %c0_21 = arith.constant 0 : index
    %c0_22 = arith.constant 0 : index
    %23 = vector.load %arg5[%c0_21, %c0_22] : memref<1x32xf32, #tpu.memory_space<vmem>>, vector<1x32xf32>
    %24 = vector.shape_cast %19 : vector<2x8x32xf32> to vector<16x32xf32>
    %cst_23 = arith.constant dense<0.000000e+00> : vector<16x32xf32>
    %25 = tpu.matmul %24, %22, %cst_23 {dimension_numbers = #tpu.dot_dimension_numbers<[1], [0], [0], [1], [0, 0, 1, 1], [], []>} : vector<16x32xf32>, vector<32x32xf32>, vector<16x32xf32> -> vector<16x32xf32>
    %26 = vector.broadcast %23 : vector<1x32xf32> to vector<16x32xf32>
    %27 = arith.addf %25, %26 : vector<16x32xf32>
    %cst_24 = arith.constant 0.000000e+00 : f32
    %28 = vector.broadcast %cst_24 : f32 to vector<16x32xf32>
    %29 = arith.maximumf %27, %28 : vector<16x32xf32>
    %cst_25 = arith.constant dense<0.000000e+00> : vector<16xf32>
    %30 = vector.multi_reduction <add>, %29, %cst_25 [1] : vector<16x32xf32> to vector<16xf32>
    %31 = vector.shape_cast %30 : vector<16xf32> to vector<16x1xf32>
    %cst_26 = arith.constant 3.200000e+01 : f32
    %32 = vector.broadcast %cst_26 : f32 to vector<16x1xf32>
    %33 = arith.divf %31, %32 : vector<16x1xf32>
    %34 = arith.mulf %29, %29 : vector<16x32xf32>
    %cst_27 = arith.constant dense<0.000000e+00> : vector<16xf32>
    %35 = vector.multi_reduction <add>, %34, %cst_27 [1] : vector<16x32xf32> to vector<16xf32>
    %36 = vector.shape_cast %35 : vector<16xf32> to vector<16x1xf32>
    %cst_28 = arith.constant 3.200000e+01 : f32
    %37 = vector.broadcast %cst_28 : f32 to vector<16x1xf32>
    %38 = arith.divf %36, %37 : vector<16x1xf32>
    %39 = arith.mulf %33, %33 : vector<16x1xf32>
    %40 = arith.subf %38, %39 : vector<16x1xf32>
    %cst_29 = arith.constant 0.000000e+00 : f32
    %41 = vector.broadcast %cst_29 : f32 to vector<16x1xf32>
    %42 = arith.maximumf %40, %41 : vector<16x1xf32>
    %43 = vector.broadcast %33 : vector<16x1xf32> to vector<16x32xf32>
    %44 = arith.subf %29, %43 : vector<16x32xf32>
    %cst_30 = arith.constant 9.99999974E-6 : f32
    %45 = vector.broadcast %cst_30 : f32 to vector<16x1xf32>
    %46 = arith.addf %42, %45 : vector<16x1xf32>
    %47 = math.rsqrt %46 : vector<16x1xf32>
    %48 = vector.broadcast %47 : vector<16x1xf32> to vector<16x32xf32>
    %49 = arith.mulf %44, %48 : vector<16x32xf32>
    %50 = vector.broadcast %20 : vector<1x32xf32> to vector<16x32xf32>
    %51 = arith.mulf %49, %50 : vector<16x32xf32>
    %52 = vector.broadcast %21 : vector<1x32xf32> to vector<16x32xf32>
    %53 = arith.addf %51, %52 : vector<16x32xf32>
    %54 = vector.shape_cast %53 : vector<16x32xf32> to vector<2x8x32xf32>
    %c0_31 = arith.constant 0 : index
    %c0_32 = arith.constant 0 : index
    %55 = vector.load %arg6[%c0_31, %c0_32] : memref<32x32xf32, #tpu.memory_space<vmem>>, vector<32x32xf32>
    %c0_33 = arith.constant 0 : index
    %c0_34 = arith.constant 0 : index
    %56 = vector.load %arg7[%c0_33, %c0_34] : memref<1x32xf32, #tpu.memory_space<vmem>>, vector<1x32xf32>
    %57 = vector.shape_cast %1 : vector<2x8x32xf32> to vector<16x32xf32>
    %cst_35 = arith.constant dense<0.000000e+00> : vector<16x32xf32>
    %58 = tpu.matmul %57, %55, %cst_35 {dimension_numbers = #tpu.dot_dimension_numbers<[1], [0], [0], [1], [0, 0, 1, 1], [], []>} : vector<16x32xf32>, vector<32x32xf32>, vector<16x32xf32> -> vector<16x32xf32>
    %59 = vector.broadcast %56 : vector<1x32xf32> to vector<16x32xf32>
    %60 = arith.addf %58, %59 : vector<16x32xf32>
    %cst_36 = arith.constant 0.000000e+00 : f32
    %61 = vector.broadcast %cst_36 : f32 to vector<16x32xf32>
    %62 = arith.maximumf %60, %61 : vector<16x32xf32>
    %cst_37 = arith.constant dense<0.000000e+00> : vector<16xf32>
    %63 = vector.multi_reduction <add>, %62, %cst_37 [1] : vector<16x32xf32> to vector<16xf32>
    %64 = vector.shape_cast %63 : vector<16xf32> to vector<16x1xf32>
    %cst_38 = arith.constant 3.200000e+01 : f32
    %65 = vector.broadcast %cst_38 : f32 to vector<16x1xf32>
    %66 = arith.divf %64, %65 : vector<16x1xf32>
    %67 = arith.mulf %62, %62 : vector<16x32xf32>
    %cst_39 = arith.constant dense<0.000000e+00> : vector<16xf32>
    %68 = vector.multi_reduction <add>, %67, %cst_39 [1] : vector<16x32xf32> to vector<16xf32>
    %69 = vector.shape_cast %68 : vector<16xf32> to vector<16x1xf32>
    %cst_40 = arith.constant 3.200000e+01 : f32
    %70 = vector.broadcast %cst_40 : f32 to vector<16x1xf32>
    %71 = arith.divf %69, %70 : vector<16x1xf32>
    %72 = arith.mulf %66, %66 : vector<16x1xf32>
    %73 = arith.subf %71, %72 : vector<16x1xf32>
    %cst_41 = arith.constant 0.000000e+00 : f32
    %74 = vector.broadcast %cst_41 : f32 to vector<16x1xf32>
    %75 = arith.maximumf %73, %74 : vector<16x1xf32>
    %76 = vector.broadcast %66 : vector<16x1xf32> to vector<16x32xf32>
    %77 = arith.subf %62, %76 : vector<16x32xf32>
    %cst_42 = arith.constant 9.99999974E-6 : f32
    %78 = vector.broadcast %cst_42 : f32 to vector<16x1xf32>
    %79 = arith.addf %75, %78 : vector<16x1xf32>
    %80 = math.rsqrt %79 : vector<16x1xf32>
    %81 = vector.broadcast %80 : vector<16x1xf32> to vector<16x32xf32>
    %82 = arith.mulf %77, %81 : vector<16x32xf32>
    %83 = vector.broadcast %20 : vector<1x32xf32> to vector<16x32xf32>
    %84 = arith.mulf %82, %83 : vector<16x32xf32>
    %85 = vector.broadcast %21 : vector<1x32xf32> to vector<16x32xf32>
    %86 = arith.addf %84, %85 : vector<16x32xf32>
    %87 = vector.shape_cast %86 : vector<16x32xf32> to vector<2x8x32xf32>
    %c0_43 = arith.constant 0 : index
    %c0_44 = arith.constant 0 : index
    %c0_45 = arith.constant 0 : index
    %88 = vector.load %arg10[%c0_43, %c0_44, %c0_45] : memref<2x8x32xf32, #tpu.memory_space<vmem>>, vector<2x8x32xf32>
    tpu.vector_store %arg10[%c0_43, %c0_44, %c0_45], %54 {strides = array<i32>} : memref<2x8x32xf32, #tpu.memory_space<vmem>>, vector<2x8x32xf32>,
    %c0_46 = arith.constant 0 : index
    %c0_47 = arith.constant 0 : index
    %c0_48 = arith.constant 0 : index
    %89 = vector.load %arg11[%c0_46, %c0_47, %c0_48] : memref<2x8x32xf32, #tpu.memory_space<vmem>>, vector<2x8x32xf32>
    tpu.vector_store %arg11[%c0_46, %c0_47, %c0_48], %87 {strides = array<i32>} : memref<2x8x32xf32, #tpu.memory_space<vmem>>, vector<2x8x32xf32>,
    return
  }
  func.func @transform_0(%arg0: i32) -> (i32, i32, i32) {
    %c0_i32 = arith.constant 0 : i32
    %c0_i32_0 = arith.constant 0 : i32
    %c0_i32_1 = arith.constant 0 : i32
    return %arg0, %c0_i32, %c0_i32_0 : i32, i32, i32
  }
  func.func @transform_1(%arg0: i32) -> (i32, i32, i32) {
    %c0_i32 = arith.constant 0 : i32
    %c0_i32_0 = arith.constant 0 : i32
    %c0_i32_1 = arith.constant 0 : i32
    return %arg0, %c0_i32, %c0_i32_0 : i32, i32, i32
  }
  func.func @transform_2(%arg0: i32) -> (i32, i32, i32) {
    %c0_i32 = arith.constant 0 : i32
    %c0_i32_0 = arith.constant 0 : i32
    %c0_i32_1 = arith.constant 0 : i32
    return %arg0, %c0_i32, %c0_i32_0 : i32, i32, i32
  }
  func.func @transform_3(%arg0: i32) -> (i32, i32) {
    %c0_i32 = arith.constant 0 : i32
    %c0_i32_0 = arith.constant 0 : i32
    %c0_i32_1 = arith.constant 0 : i32
    return %c0_i32, %c0_i32_0 : i32, i32
  }
  func.func @transform_4(%arg0: i32) -> (i32, i32) {
    %c0_i32 = arith.constant 0 : i32
    %c0_i32_0 = arith.constant 0 : i32
    %c0_i32_1 = arith.constant 0 : i32
    return %c0_i32, %c0_i32_0 : i32, i32
  }
  func.func @transform_5(%arg0: i32) -> (i32, i32) {
    %c0_i32 = arith.constant 0 : i32
    %c0_i32_0 = arith.constant 0 : i32
    %c0_i32_1 = arith.constant 0 : i32
    return %c0_i32, %c0_i32_0 : i32, i32
  }
  func.func @transform_6(%arg0: i32) -> (i32, i32) {
    %c0_i32 = arith.constant 0 : i32
    %c0_i32_0 = arith.constant 0 : i32
    %c0_i32_1 = arith.constant 0 : i32
    return %c0_i32, %c0_i32_0 : i32, i32
  }
  func.func @transform_7(%arg0: i32) -> (i32, i32) {
    %c0_i32 = arith.constant 0 : i32
    %c0_i32_0 = arith.constant 0 : i32
    %c0_i32_1 = arith.constant 0 : i32
    return %c0_i32, %c0_i32_0 : i32, i32
  }
  func.func @transform_8(%arg0: i32) -> (i32, i32) {
    %c0_i32 = arith.constant 0 : i32
    %c0_i32_0 = arith.constant 0 : i32
    %c0_i32_1 = arith.constant 0 : i32
    return %c0_i32, %c0_i32_0 : i32, i32
  }
  func.func @transform_9(%arg0: i32) -> (i32, i32, i32) {
    %c0_i32 = arith.constant 0 : i32
    %c0_i32_0 = arith.constant 0 : i32
    %c0_i32_1 = arith.constant 0 : i32
    return %arg0, %c0_i32, %c0_i32_0 : i32, i32, i32
  }
  func.func @transform_10(%arg0: i32) -> (i32, i32, i32) {
    %c0_i32 = arith.constant 0 : i32
    %c0_i32_0 = arith.constant 0 : i32
    %c0_i32_1 = arith.constant 0 : i32
    return %arg0, %c0_i32, %c0_i32_0 : i32, i32, i32
  }
  func.func @transform_11(%arg0: i32) -> (i32, i32) {
    %c0_i32 = arith.constant 0 : i32
    %c0_i32_0 = arith.constant 0 : i32
    return %arg0, %c0_i32 : i32, i32
  }
}

</mosaic_0001>

<llo_original>
// kernel: tpu_custom_call.1
$region0: #{tpu_custom_call.1}
  #allocation0 [shape = 'u32[]', space=smem, size = 0x4, offset = 0x4, fixed_abs, tag = 'smem constant byte address 0x4 - core index']
  #allocation1 [shape = 'u32[72,128]{1,0:T(1,128)}', space=vmem, size = 0x9000, scoped, tag = 'internal scratch']
  %s0 = inlined_call_operand.hbm [shape: f32[2,8,32], index: 0, kind: input, shape index: {}]
  %s1 = inlined_call_operand.hbm [shape: f32[2,8,32], index: 1, kind: input, shape index: {}]
  %s2 = inlined_call_operand.hbm [shape: f32[2,8,32], index: 2, kind: input, shape index: {}]
  %s3 = inlined_call_operand.hbm [shape: f32[32,32], index: 3, kind: input, shape index: {}]
  %s4 = inlined_call_operand.vmem [shape: f32[1,32], index: 4, kind: input, shape index: {}]
  %s5 = inlined_call_operand.hbm [shape: f32[32,32], index: 5, kind: input, shape index: {}]
  %s6 = inlined_call_operand.vmem [shape: f32[1,32], index: 6, kind: input, shape index: {}]
  %s7 = inlined_call_operand.vmem [shape: f32[1,32], index: 7, kind: input, shape index: {}]
  %s8 = inlined_call_operand.vmem [shape: f32[1,32], index: 8, kind: input, shape index: {}]
  %s9 = inlined_call_operand.hbm [shape: f32[2,8,32], index: 9, kind: output, shape index: {0}]
  %s10 = inlined_call_operand.hbm [shape: f32[2,8,32], index: 10, kind: output, shape index: {1}]
  %s11 = inlined_call_operand.hbm [shape: f32[2,64], index: 11, kind: output, shape index: {2}]
  %12 = xla_tuple %s9, %s10, %s11
  %s13 = sld [smem:[#allocation0]]
  $region82: #{tpu_custom_call.1} parent=0
    _
  %s15 = ssub.s32 1, %s13
  %s16 = scalar_select 0, %s15, %s13
  $region1: #{tpu_custom_call.1} parent=0
    #allocation2 [shape = 'u8[8192]{0}', space=vmem, size = 0x2000, scoped, tag = 'input window, operand 0, single buffered']
    #allocation3 [shape = 's32[1]{0}', space=sflag, size = 0x4, scoped, tag = 'scoped memory for tpu_custom_call.1']
    #allocation4 [shape = 's32[1]{0}', space=sflag, size = 0x4, scoped, tag = 'scoped memory for tpu_custom_call.1']
    #allocation5 [shape = 'u8[8192]{0}', space=vmem, size = 0x2000, scoped, tag = 'input window, operand 1, single buffered']
    #allocation6 [shape = 's32[1]{0}', space=sflag, size = 0x4, scoped, tag = 'scoped memory for tpu_custom_call.1']
    #allocation7 [shape = 'u8[8192]{0}', space=vmem, size = 0x2000, scoped, tag = 'input window, operand 2, single buffered']
    #allocation8 [shape = 'u8[16384]{0}', space=vmem, size = 0x4000, scoped, tag = 'input window, operand 3, single buffered']
    #allocation9 [shape = 's32[1]{0}', space=sflag, size = 0x4, scoped, tag = 'scoped memory for tpu_custom_call.1']
    #allocation10 [shape = 'u8[16384]{0}', space=vmem, size = 0x4000, scoped, tag = 'input window, operand 5, single buffered']
    #allocation11 [shape = 'u8[8192]{0}', space=vmem, size = 0x2000, scoped, tag = 'output window, operand 0, single buffered']
    #allocation12 [shape = 'u8[8192]{0}', space=vmem, size = 0x2000, scoped, tag = 'output window, operand 1, single buffered']
    #allocation13 [shape = 's32[1]{0}', space=sflag, size = 0x4, scoped, tag = 'scoped memory for tpu_custom_call.1']
    #allocation14 [shape = 'u8[1024]{0}', space=vmem, size = 0x400, scoped, tag = 'output window, operand 2, single buffered']
    %17 = vsyncpa [#allocation3], 0
    %18 = vsyncpa [#allocation6], 0
    %19 = vsyncpa [#allocation9], 0
    %20 = vsyncpa [#allocation4], 0
    %21 = vsyncpa [#allocation13], 0
    // Predicated region
    $region2: #{tpu_custom_call.1} parent=1 // pred_check
      _
    $region3: #{tpu_custom_call.1} parent=1 // pred_check_branch
      %23 = sbr.rel (0) target = $region5
    $region4: #{tpu_custom_call.1} parent=1 // pred_region
      %25 = vsyncadd [#allocation3], 0
      %s26 = sshll.u32 %s0, 4
      %s27 = int_to_ptr.hbm [resolvable:$true] %s26
      %s28 = sshll.u32 [#allocation2], 4
      %s29 = int_to_ptr.vmem [resolvable:$true] %s28
      %34 = dma.hbm_to_vmem [thread:$0]  %s27, 256, %s29, [#allocation3], 128, 128, 8
    $region5: #{tpu_custom_call.1} parent=1 // pred_fallthru
      _
    // Predicated region
    $region6: #{tpu_custom_call.1} parent=1 // pred_check
      _
    $region7: #{tpu_custom_call.1} parent=1 // pred_check_branch
      %36 = sbr.rel (0) target = $region9
    $region8: #{tpu_custom_call.1} parent=1 // pred_region
      %38 = vsyncadd [#allocation6], 0
      %s39 = sshll.u32 %s1, 4
      %s40 = int_to_ptr.hbm [resolvable:$true] %s39
      %s41 = sshll.u32 [#allocation5], 4
      %s42 = int_to_ptr.vmem [resolvable:$true] %s41
      %47 = dma.hbm_to_vmem [thread:$0]  %s40, 256, %s42, [#allocation6], 128, 128, 8
    $region9: #{tpu_custom_call.1} parent=1 // pred_fallthru
      _
    // Predicated region
    $region10: #{tpu_custom_call.1} parent=1 // pred_check
      _
    $region11: #{tpu_custom_call.1} parent=1 // pred_check_branch
      %49 = sbr.rel (0) target = $region13
    $region12: #{tpu_custom_call.1} parent=1 // pred_region
      %51 = vsyncadd [#allocation6], 0
      %s52 = sshll.u32 %s2, 4
      %s53 = int_to_ptr.hbm [resolvable:$true] %s52
      %s54 = sshll.u32 [#allocation7], 4
      %s55 = int_to_ptr.vmem [resolvable:$true] %s54
      %60 = dma.hbm_to_vmem [thread:$0]  %s53, 256, %s55, [#allocation6], 128, 128, 8
    $region13: #{tpu_custom_call.1} parent=1 // pred_fallthru
      _
    // Predicated region
    $region14: #{tpu_custom_call.1} parent=1 // pred_check
      _
    $region15: #{tpu_custom_call.1} parent=1 // pred_check_branch
      %62 = sbr.rel (0) target = $region17
    $region16: #{tpu_custom_call.1} parent=1 // pred_region
      %64 = vsyncadd [#allocation9], 0
      %s65 = sshll.u32 %s3, 4
      %s66 = int_to_ptr.hbm [resolvable:$true] %s65
      %s67 = sshll.u32 [#allocation8], 4
      %s68 = int_to_ptr.vmem [resolvable:$true] %s67
      %73 = dma.hbm_to_vmem [thread:$0]  %s66, 512, %s68, [#allocation9], 128, 128, 8
    $region17: #{tpu_custom_call.1} parent=1 // pred_fallthru
      _
    // Predicated region
    $region18: #{tpu_custom_call.1} parent=1 // pred_check
      _
    $region19: #{tpu_custom_call.1} parent=1 // pred_check_branch
      %75 = sbr.rel (0) target = $region21
    $region20: #{tpu_custom_call.1} parent=1 // pred_region
      _
    $region21: #{tpu_custom_call.1} parent=1 // pred_fallthru
      _
    // Predicated region
    $region22: #{tpu_custom_call.1} parent=1 // pred_check
      _
    $region23: #{tpu_custom_call.1} parent=1 // pred_check_branch
      %77 = sbr.rel (0) target = $region25
    $region24: #{tpu_custom_call.1} parent=1 // pred_region
      %79 = vsyncadd [#allocation9], 0
      %s80 = sshll.u32 %s5, 4
      %s81 = int_to_ptr.hbm [resolvable:$true] %s80
      %s82 = sshll.u32 [#allocation10], 4
      %s83 = int_to_ptr.vmem [resolvable:$true] %s82
      %88 = dma.hbm_to_vmem [thread:$0]  %s81, 512, %s83, [#allocation9], 128, 128, 8
    $region25: #{tpu_custom_call.1} parent=1 // pred_fallthru
      _
    // Predicated region
    $region26: #{tpu_custom_call.1} parent=1 // pred_check
      _
    $region27: #{tpu_custom_call.1} parent=1 // pred_check_branch
      %90 = sbr.rel (0) target = $region29
    $region28: #{tpu_custom_call.1} parent=1 // pred_region
      _
    $region29: #{tpu_custom_call.1} parent=1 // pred_fallthru
      _
    // Predicated region
    $region30: #{tpu_custom_call.1} parent=1 // pred_check
      _
    $region31: #{tpu_custom_call.1} parent=1 // pred_check_branch
      %92 = sbr.rel (0) target = $region33
    $region32: #{tpu_custom_call.1} parent=1 // pred_region
      _
    $region33: #{tpu_custom_call.1} parent=1 // pred_fallthru
      _
    // Predicated region
    $region34: #{tpu_custom_call.1} parent=1 // pred_check
      _
    $region35: #{tpu_custom_call.1} parent=1 // pred_check_branch
      %94 = sbr.rel (0) target = $region37
    $region36: #{tpu_custom_call.1} parent=1 // pred_region
      _
    $region37: #{tpu_custom_call.1} parent=1 // pred_fallthru
      _
    // Predicated region
    $region38: #{tpu_custom_call.1} parent=1 // pred_check
      _
    $region39: #{tpu_custom_call.1} parent=1 // pred_check_branch
      %96 = sbr.rel (0) target = $region41
    $region40: #{tpu_custom_call.1} parent=1 // pred_region
      %98 = dma.done [#allocation3], 256
    $region41: #{tpu_custom_call.1} parent=1 // pred_fallthru
      _
    // Predicated region
    $region42: #{tpu_custom_call.1} parent=1 // pred_check
      _
    $region43: #{tpu_custom_call.1} parent=1 // pred_check_branch
      %100 = sbr.rel (0) target = $region45
    $region44: #{tpu_custom_call.1} parent=1 // pred_region
      %102 = dma.done [#allocation6], 256
    $region45: #{tpu_custom_call.1} parent=1 // pred_fallthru
      _
    // Predicated region
    $region46: #{tpu_custom_call.1} parent=1 // pred_check
      _
    $region47: #{tpu_custom_call.1} parent=1 // pred_check_branch
      %104 = sbr.rel (0) target = $region49
    $region48: #{tpu_custom_call.1} parent=1 // pred_region
      %106 = dma.done [#allocation6], 256
    $region49: #{tpu_custom_call.1} parent=1 // pred_fallthru
      _
    // Predicated region
    $region50: #{tpu_custom_call.1} parent=1 // pred_check
      _
    $region51: #{tpu_custom_call.1} parent=1 // pred_check_branch
      %108 = sbr.rel (0) target = $region53
    $region52: #{tpu_custom_call.1} parent=1 // pred_region
      %110 = dma.done [#allocation9], 512
    $region53: #{tpu_custom_call.1} parent=1 // pred_fallthru
      _
    // Predicated region
    $region54: #{tpu_custom_call.1} parent=1 // pred_check
      _
    $region55: #{tpu_custom_call.1} parent=1 // pred_check_branch
      %112 = sbr.rel (0) target = $region57
    $region56: #{tpu_custom_call.1} parent=1 // pred_region
      %114 = dma.done [#allocation9], 512
    $region57: #{tpu_custom_call.1} parent=1 // pred_fallthru
      _
    %v115 = vld [vmem:[#allocation2] sm:$0xff]
    %v116 = vld [vmem:[#allocation2 + $0x8] sm:$0xff]
    %v117 = vld [vmem:[#allocation5] sm:$0xff]
    %v118 = vld [vmem:[#allocation5 + $0x8] sm:$0xff]
    %v119 = vld [vmem:[#allocation7] sm:$0xff]
    %v120 = vld [vmem:[#allocation7 + $0x8] sm:$0xff]
    %v121 = vmul.f32 %v115, 0.17677669
    %v122 = vmul.f32 %v116, 0.17677669
    %vm123 = vcmask 261120
    %v125 = vsel %vm123, %v121, 0
    %v128 = vsel %vm123, %v117, 0
    %130 = vmatpush.xpose.msra.mxu0 0.0
    %131 = vmatpush.xpose.msra.mxu0 0.0
    %132 = vmatpush.xpose.msra.mxu0 0.0
    %133 = vmatpush.xpose.msra.mxu0 0.0
    %134 = vmatpush.xpose.msra.mxu0 0.0
    %135 = vmatpush.xpose.msra.mxu0 0.0
    %136 = vmatpush.xpose.msra.mxu0 0.0
    %137 = vmatpush.xpose.msra.mxu0 0.0
    %138 = vmatpush.xpose.msra.mxu0 0.0
    %139 = vmatpush.xpose.msra.mxu0 0.0
    %140 = vmatpush.xpose.msra.mxu0 0.0
    %141 = vmatpush.xpose.msra.mxu0 0.0
    %142 = vmatpush.xpose.msra.mxu0 0.0
    %143 = vmatpush.xpose.msra.mxu0 0.0
    %144 = vmatpush.xpose.msra.mxu0 0.0
    %145 = vmatpush.xpose.msra.mxu0 %v128
    %146 = vmatmul.f32.gmra.mxu0 %v125
    %v147 = vpop.f32.mrf.mxu0
    %v148 = vadd.f32 0.0, %v147
    %149 = vdwg.mxu0
    %v151 = vsel %vm123, %v122, 0
    %v154 = vsel %vm123, %v118, 0
    %156 = vmatpush.xpose.msra.mxu0 0.0
    %157 = vmatpush.xpose.msra.mxu0 0.0
    %158 = vmatpush.xpose.msra.mxu0 0.0
    %159 = vmatpush.xpose.msra.mxu0 0.0
    %160 = vmatpush.xpose.msra.mxu0 0.0
    %161 = vmatpush.xpose.msra.mxu0 0.0
    %162 = vmatpush.xpose.msra.mxu0 0.0
    %163 = vmatpush.xpose.msra.mxu0 0.0
    %164 = vmatpush.xpose.msra.mxu0 0.0
    %165 = vmatpush.xpose.msra.mxu0 0.0
    %166 = vmatpush.xpose.msra.mxu0 0.0
    %167 = vmatpush.xpose.msra.mxu0 0.0
    %168 = vmatpush.xpose.msra.mxu0 0.0
    %169 = vmatpush.xpose.msra.mxu0 0.0
    %170 = vmatpush.xpose.msra.mxu0 0.0
    %171 = vmatpush.xpose.msra.mxu0 %v154
    %172 = vmatmul.f32.gmra.mxu0 %v151
    %v173 = vpop.f32.mrf.mxu0
    %v174 = vadd.f32 0.0, %v173
    %175 = vdwg.mxu0
    %vm176 = vcmask 64512
    %v177 = vsel %vm176, %v148, -inf
    %178 = vmax.xlane.f32.xlu0 %v177
    %v179 = vpop.xlane.xlu0 %178
    %v180 = vsel %vm176, %v174, -inf
    %181 = vmax.xlane.f32.xlu0 %v180
    %v182 = vpop.xlane.xlu0 %181
    %v183 = vsub.f32 %v148, %v179
    %v184 = vsub.f32 %v174, %v182
    %v185 = vmul.f32 %v183, 1.442695
    %v186 = vpow.pop %v185
    %v187 = vmul.f32 %v184, 1.442695
    %v188 = vpow.pop %v187
    %v189 = vsel %vm176, %v186, 0.0
    %190 = vadd.xlane.f32.xlu0 %v189
    %v191 = vpop.xlane.xlu0 %190
    %v192 = vsel %vm176, %v188, 0.0
    %193 = vadd.xlane.f32.xlu0 %v192
    %v194 = vpop.xlane.xlu0 %193
    %v195 = vrcp.pop %v191
    %v196 = vmul.f32 %v191, %v195
    %v197 = vsub.f32 1.0, %v196
    %v198 = vmul.f32 %v195, %v197
    %v199 = vadd.f32 %v195, %v198
    %vm200 = vweird.f32 %v191
    %vm201 = vweird.f32 %v195
    %vm202 = vmor %vm200, %vm201
    %v203 = vsel %vm202, %v195, %v199
    %v204 = vand.u32 2147483647, %v191
    %vm205 = vcmp.eq.f32.partialorder %v204, 8.507059e+37
    %v206 = vand.u32 %v191, 2147483648
    %v207 = vor.u32 1.1754944e-38, %v206
    %v208 = vsel %vm205, %v207, %v203
    %v209 = vmul.f32 1.0, %v208
    %v210 = vrcp.pop %v194
    %v211 = vmul.f32 %v194, %v210
    %v212 = vsub.f32 1.0, %v211
    %v213 = vmul.f32 %v210, %v212
    %v214 = vadd.f32 %v210, %v213
    %vm215 = vweird.f32 %v194
    %vm216 = vweird.f32 %v210
    %vm217 = vmor %vm215, %vm216
    %v218 = vsel %vm217, %v210, %v214
    %v219 = vand.u32 2147483647, %v194
    %vm220 = vcmp.eq.f32.partialorder %v219, 8.507059e+37
    %v221 = vand.u32 %v194, 2147483648
    %v222 = vor.u32 1.1754944e-38, %v221
    %v223 = vsel %vm220, %v222, %v218
    %v224 = vmul.f32 1.0, %v223
    %v225 = vmul.f32 %v186, %v209
    %v226 = vmul.f32 %v188, %v224
    %v227 = vrot.slane %v225, 4
    %vm228 = vcmask 1047556
    %v229 = vsel %vm228, 0.0, %v227
    %v231 = vunpack.c.l.s4 1983009808
    %v232 = vunpack.c.0.s8 %v231
    %v233 = vperm.slane %v225, %v232
    %v235 = vunpack.c.l.s4 1983009808
    %v236 = vunpack.c.0.s8 %v235
    %v237 = vperm.slane %v229, %v236
    %v238 = vrot.slane %v226, 4
    %v239 = vsel %vm228, 0.0, %v238
    %v241 = vunpack.c.l.s4 1983009808
    %v242 = vunpack.c.0.s8 %v241
    %v243 = vperm.slane %v226, %v242
    %v245 = vunpack.c.l.s4 1983009808
    %v246 = vunpack.c.0.s8 %v245
    %v247 = vperm.slane %v239, %v246
    %v248 = vrot.slane %v243, 4
    %v249 = vsel %vm228, %v248, %v233
    %v250 = vrot.slane %v233, 4
    %v251 = vsel %vm228, %v243, %v250
    %v253 = vunpack.c.l.s4 1934713408
    %v254 = vunpack.c.0.s8 %v253
    %v255 = vperm.slane %v249, %v254
    %v257 = vunpack.c.l.s4 1934713408
    %v258 = vunpack.c.0.s8 %v257
    %v259 = vperm.slane %v251, %v258
    %v260 = vrot.slane %v247, 4
    %v261 = vsel %vm228, %v260, %v237
    %v262 = vrot.slane %v237, 4
    %v263 = vsel %vm228, %v247, %v262
    %v265 = vunpack.c.l.s4 1934713408
    %v266 = vunpack.c.0.s8 %v265
    %v267 = vperm.slane %v261, %v266
    %v269 = vunpack.c.l.s4 1934713408
    %v270 = vunpack.c.0.s8 %v269
    %v271 = vperm.slane %v263, %v270
    %v272 = vrot.slane %v255, 4
    %v273 = vsel %vm228, 0.0, %v272
    %v274 = vrot.slane %v259, 4
    %v275 = vsel %vm228, 0.0, %v274
    %v276 = vrot.slane %v267, 4
    %v277 = vsel %vm228, 0.0, %v276
    %v278 = vrot.slane %v271, 4
    %v279 = vsel %vm228, 0.0, %v278
    %281 = vrot.lane.b32.xlu0 %v273, 8
    %v282 = vpop.permute.xlu0 %281
    %285 = vrot.lane.b32.xlu0 %v259, 16
    %v286 = vpop.permute.xlu0 %285
    %289 = vrot.lane.b32.xlu0 %v275, 24
    %v290 = vpop.permute.xlu0 %289
    %293 = vrot.lane.b32.xlu0 %v267, 32
    %v294 = vpop.permute.xlu0 %293
    %297 = vrot.lane.b32.xlu0 %v277, 40
    %v298 = vpop.permute.xlu0 %297
    %301 = vrot.lane.b32.xlu0 %v271, 48
    %v302 = vpop.permute.xlu0 %301
    %305 = vrot.lane.b32.xlu0 %v279, 56
    %v306 = vpop.permute.xlu0 %305
    %v308 = vsel %vm176, %v255, %v282
    %vm309 = vcmask 130048
    %v310 = vsel %vm309, %v308, %v286
    %vm311 = vcmask 195584
    %v312 = vsel %vm311, %v310, %v290
    %v313 = vsel %vm123, %v312, %v294
    %vm314 = vcmask 326656
    %v315 = vsel %vm314, %v313, %v298
    %vm316 = vcmask 392192
    %v317 = vsel %vm316, %v315, %v302
    %vm318 = vcmask 457728
    %v319 = vsel %vm318, %v317, %v306
    %vm320 = vcmask 517120
    %321 = vst.msk [vmem:[#allocation14] sm:$0x3] %vm320, %v319
    %v323 = vsel %vm176, %v225, 0
    %325 = vmatpush.msra.mxu0 0.0
    %326 = vmatpush.msra.mxu0 0.0
    %327 = vmatpush.msra.mxu0 0.0
    %328 = vmatpush.msra.mxu0 0.0
    %329 = vmatpush.msra.mxu0 0.0
    %330 = vmatpush.msra.mxu0 0.0
    %331 = vmatpush.msra.mxu0 0.0
    %332 = vmatpush.msra.mxu0 0.0
    %333 = vmatpush.msra.mxu0 0.0
    %334 = vmatpush.msra.mxu0 0.0
    %335 = vmatpush.msra.mxu0 0.0
    %336 = vmatpush.msra.mxu0 0.0
    %337 = vmatpush.msra.mxu0 0.0
    %338 = vmatpush.msra.mxu0 0.0
    %339 = vmatpush.msra.mxu0 0.0
    %340 = vmatpush.msra.mxu0 %v119
    %341 = vmatmul.f32.gmra.mxu0 %v323
    %v342 = vpop.f32.mrf.mxu0
    %v343 = vadd.f32 0.0, %v342
    %344 = vdwg.mxu0
    %v346 = vsel %vm176, %v226, 0
    %348 = vmatpush.msra.mxu0 0.0
    %349 = vmatpush.msra.mxu0 0.0
    %350 = vmatpush.msra.mxu0 0.0
    %351 = vmatpush.msra.mxu0 0.0
    %352 = vmatpush.msra.mxu0 0.0
    %353 = vmatpush.msra.mxu0 0.0
    %354 = vmatpush.msra.mxu0 0.0
    %355 = vmatpush.msra.mxu0 0.0
    %356 = vmatpush.msra.mxu0 0.0
    %357 = vmatpush.msra.mxu0 0.0
    %358 = vmatpush.msra.mxu0 0.0
    %359 = vmatpush.msra.mxu0 0.0
    %360 = vmatpush.msra.mxu0 0.0
    %361 = vmatpush.msra.mxu0 0.0
    %362 = vmatpush.msra.mxu0 0.0
    %363 = vmatpush.msra.mxu0 %v120
    %364 = vmatmul.f32.gmra.mxu0 %v346
    %v365 = vpop.f32.mrf.mxu0
    %v366 = vadd.f32 0.0, %v365
    %367 = vdwg.mxu0
    %v368 = vld [vmem:[%s7] sm:$0x1]
    %v369 = vld [vmem:[%s8] sm:$0x1]
    %v370 = vld [vmem:[#allocation8] sm:$0xff]
    %v371 = vld [vmem:[#allocation8 + $0x8] sm:$0xff]
    %v372 = vld [vmem:[#allocation8 + $0x10] sm:$0xff]
    %v373 = vld [vmem:[#allocation8 + $0x18] sm:$0xff]
    %v374 = vld [vmem:[%s4] sm:$0x1]
    %v376 = vperm.slane %v374, 0
    %v379 = vsel %vm123, %v343, 0
    %v382 = vsel %vm123, %v366, 0
    %384 = vmatpush.msra.mxu0 0.0
    %385 = vmatpush.msra.mxu0 0.0
    %386 = vmatpush.msra.mxu0 0.0
    %387 = vmatpush.msra.mxu0 0.0
    %388 = vmatpush.msra.mxu0 0.0
    %389 = vmatpush.msra.mxu0 0.0
    %390 = vmatpush.msra.mxu0 0.0
    %391 = vmatpush.msra.mxu0 0.0
    %392 = vmatpush.msra.mxu0 0.0
    %393 = vmatpush.msra.mxu0 0.0
    %394 = vmatpush.msra.mxu0 0.0
    %395 = vmatpush.msra.mxu0 0.0
    %396 = vmatpush.msra.mxu0 %v373
    %397 = vmatpush.msra.mxu0 %v372
    %398 = vmatpush.msra.mxu0 %v371
    %399 = vmatpush.msra.mxu0 %v370
    %400 = vmatmul.f32.gmra.mxu0 %v379
    %v401 = vpop.f32.mrf.mxu0
    %v402 = vadd.f32 %v376, %v401
    %403 = vmatmul.f32.gmra.mxu0 %v382
    %v404 = vpop.f32.mrf.mxu0
    %v405 = vadd.f32 %v376, %v404
    %406 = vdwg.mxu0
    %v407 = vmax.f32 %v402, 0.0
    %v408 = vmax.f32 %v405, 0.0
    %v409 = vsel %vm123, %v407, 0.0
    %410 = vadd.xlane.f32.xlu0 %v409
    %v411 = vpop.xlane.xlu0 %410
    %v412 = vsel %vm123, %v408, 0.0
    %413 = vadd.xlane.f32.xlu0 %v412
    %v414 = vpop.xlane.xlu0 %413
    %v415 = vrcp.pop 32.0
    %v416 = vmul.f32 32.0, %v415
    %v417 = vsub.f32 1.0, %v416
    %v418 = vmul.f32 %v415, %v417
    %v419 = vadd.f32 %v415, %v418
    %vm420 = vweird.f32 %v415
    %v421 = vsel %vm420, %v415, %v419
    %v422 = vmul.f32 %v411, %v421
    %v423 = vmul.f32 %v414, %v421
    %v424 = vmul.f32 %v407, %v407
    %v425 = vmul.f32 %v408, %v408
    %v426 = vsel %vm123, %v424, 0.0
    %427 = vadd.xlane.f32.xlu0 %v426
    %v428 = vpop.xlane.xlu0 %427
    %v429 = vsel %vm123, %v425, 0.0
    %430 = vadd.xlane.f32.xlu0 %v429
    %v431 = vpop.xlane.xlu0 %430
    %v432 = vmul.f32 %v428, %v421
    %v433 = vmul.f32 %v431, %v421
    %v434 = vmul.f32 %v422, %v422
    %v435 = vmul.f32 %v423, %v423
    %v436 = vsub.f32 %v432, %v434
    %v437 = vsub.f32 %v433, %v435
    %v438 = vmax.f32 %v436, 0.0
    %v439 = vmax.f32 %v437, 0.0
    %v440 = vsub.f32 %v407, %v422
    %v441 = vsub.f32 %v408, %v423
    %v442 = vadd.f32 %v438, 1e-05
    %v443 = vadd.f32 %v439, 1e-05
    %v444 = vrsqrt.pop %v442
    %v445 = vmul.f32 %v444, %v442
    %v446 = vmul.f32 %v445, %v444
    %v447 = vmul.f32 0.5, %v446
    %v448 = vsub.f32 1.5, %v447
    %v449 = vmul.f32 %v444, %v448
    %vm450 = vweird.f32 %v442
    %vm451 = vweird.f32 %v444
    %vm452 = vmor %vm450, %vm451
    %v453 = vsel %vm452, %v444, %v449
    %v454 = vrsqrt.pop %v443
    %v455 = vmul.f32 %v454, %v443
    %v456 = vmul.f32 %v455, %v454
    %v457 = vmul.f32 0.5, %v456
    %v458 = vsub.f32 1.5, %v457
    %v459 = vmul.f32 %v454, %v458
    %vm460 = vweird.f32 %v443
    %vm461 = vweird.f32 %v454
    %vm462 = vmor %vm460, %vm461
    %v463 = vsel %vm462, %v454, %v459
    %v464 = vmul.f32 %v440, %v453
    %v465 = vmul.f32 %v441, %v463
    %v467 = vperm.slane %v368, 0
    %v469 = vmul.f32 %v464, %v467
    %v470 = vmul.f32 %v465, %v467
    %v472 = vperm.slane %v369, 0
    %v474 = vadd.f32 %v469, %v472
    %v475 = vadd.f32 %v470, %v472
    %v476 = vld [vmem:[#allocation10] sm:$0xff]
    %v477 = vld [vmem:[#allocation10 + $0x8] sm:$0xff]
    %v478 = vld [vmem:[#allocation10 + $0x10] sm:$0xff]
    %v479 = vld [vmem:[#allocation10 + $0x18] sm:$0xff]
    %v480 = vld [vmem:[%s6] sm:$0x1]
    %v482 = vperm.slane %v480, 0
    %484 = vmatpush.msra.mxu0 0.0
    %485 = vmatpush.msra.mxu0 0.0
    %486 = vmatpush.msra.mxu0 0.0
    %487 = vmatpush.msra.mxu0 0.0
    %488 = vmatpush.msra.mxu0 0.0
    %489 = vmatpush.msra.mxu0 0.0
    %490 = vmatpush.msra.mxu0 0.0
    %491 = vmatpush.msra.mxu0 0.0
    %492 = vmatpush.msra.mxu0 0.0
    %493 = vmatpush.msra.mxu0 0.0
    %494 = vmatpush.msra.mxu0 0.0
    %495 = vmatpush.msra.mxu0 0.0
    %496 = vmatpush.msra.mxu0 %v479
    %497 = vmatpush.msra.mxu0 %v478
    %498 = vmatpush.msra.mxu0 %v477
    %499 = vmatpush.msra.mxu0 %v476
    %500 = vmatmul.f32.gmra.mxu0 %v128
    %v501 = vpop.f32.mrf.mxu0
    %v502 = vadd.f32 %v482, %v501
    %503 = vmatmul.f32.gmra.mxu0 %v154
    %v504 = vpop.f32.mrf.mxu0
    %v505 = vadd.f32 %v482, %v504
    %506 = vdwg.mxu0
    %v507 = vmax.f32 %v502, 0.0
    %v508 = vmax.f32 %v505, 0.0
    %v509 = vsel %vm123, %v507, 0.0
    %510 = vadd.xlane.f32.xlu0 %v509
    %v511 = vpop.xlane.xlu0 %510
    %v512 = vsel %vm123, %v508, 0.0
    %513 = vadd.xlane.f32.xlu0 %v512
    %v514 = vpop.xlane.xlu0 %513
    %v515 = vmul.f32 %v511, %v421
    %v516 = vmul.f32 %v514, %v421
    %v517 = vmul.f32 %v507, %v507
    %v518 = vmul.f32 %v508, %v508
    %v519 = vsel %vm123, %v517, 0.0
    %520 = vadd.xlane.f32.xlu0 %v519
    %v521 = vpop.xlane.xlu0 %520
    %v522 = vsel %vm123, %v518, 0.0
    %523 = vadd.xlane.f32.xlu0 %v522
    %v524 = vpop.xlane.xlu0 %523
    %v525 = vmul.f32 %v521, %v421
    %v526 = vmul.f32 %v524, %v421
    %v527 = vmul.f32 %v515, %v515
    %v528 = vmul.f32 %v516, %v516
    %v529 = vsub.f32 %v525, %v527
    %v530 = vsub.f32 %v526, %v528
    %v531 = vmax.f32 %v529, 0.0
    %v532 = vmax.f32 %v530, 0.0
    %v533 = vsub.f32 %v507, %v515
    %v534 = vsub.f32 %v508, %v516
    %v535 = vadd.f32 %v531, 1e-05
    %v536 = vadd.f32 %v532, 1e-05
    %v537 = vrsqrt.pop %v535
    %v538 = vmul.f32 %v537, %v535
    %v539 = vmul.f32 %v538, %v537
    %v540 = vmul.f32 0.5, %v539
    %v541 = vsub.f32 1.5, %v540
    %v542 = vmul.f32 %v537, %v541
    %vm543 = vweird.f32 %v535
    %vm544 = vweird.f32 %v537
    %vm545 = vmor %vm543, %vm544
    %v546 = vsel %vm545, %v537, %v542
    %v547 = vrsqrt.pop %v536
    %v548 = vmul.f32 %v547, %v536
    %v549 = vmul.f32 %v548, %v547
    %v550 = vmul.f32 0.5, %v549
    %v551 = vsub.f32 1.5, %v550
    %v552 = vmul.f32 %v547, %v551
    %vm553 = vweird.f32 %v536
    %vm554 = vweird.f32 %v547
    %vm555 = vmor %vm553, %vm554
    %v556 = vsel %vm555, %v547, %v552
    %v557 = vmul.f32 %v533, %v546
    %v558 = vmul.f32 %v534, %v556
    %v559 = vmul.f32 %v557, %v467
    %v560 = vmul.f32 %v558, %v467
    %v561 = vadd.f32 %v559, %v472
    %v562 = vadd.f32 %v560, %v472
    %563 = vst.msk [vmem:[#allocation11] sm:$0xff] %vm123, %v474
    %564 = vst.msk [vmem:[#allocation11 + $0x8] sm:$0xff] %vm123, %v475
    %565 = vst.msk [vmem:[#allocation12] sm:$0xff] %vm123, %v561
    %566 = vst.msk [vmem:[#allocation12 + $0x8] sm:$0xff] %vm123, %v562
    // Predicated region
    $region58: #{tpu_custom_call.1} parent=1 // pred_check
      _
    $region59: #{tpu_custom_call.1} parent=1 // pred_check_branch
      %568 = sbr.rel (0) target = $region61
    $region60: #{tpu_custom_call.1} parent=1 // pred_region
      %570 = vsyncadd [#allocation4], 0
      %s571 = sshll.u32 [#allocation11], 4
      %s572 = int_to_ptr.vmem [resolvable:$true] %s571
      %s573 = sshll.u32 %s9, 4
      %s574 = int_to_ptr.hbm [resolvable:$true] %s573
      %579 = dma.vmem_to_hbm [thread:$0]  %s572, 256, %s574, [#allocation4], 128, 128, 8
    $region61: #{tpu_custom_call.1} parent=1 // pred_fallthru
      _
    // Predicated region
    $region62: #{tpu_custom_call.1} parent=1 // pred_check
      _
    $region63: #{tpu_custom_call.1} parent=1 // pred_check_branch
      %581 = sbr.rel (0) target = $region65
    $region64: #{tpu_custom_call.1} parent=1 // pred_region
      %583 = vsyncadd [#allocation13], 0
      %s584 = sshll.u32 [#allocation12], 4
      %s585 = int_to_ptr.vmem [resolvable:$true] %s584
      %s586 = sshll.u32 %s10, 4
      %s587 = int_to_ptr.hbm [resolvable:$true] %s586
      %592 = dma.vmem_to_hbm [thread:$0]  %s585, 256, %s587, [#allocation13], 128, 128, 8
    $region65: #{tpu_custom_call.1} parent=1 // pred_fallthru
      _
    // Predicated region
    $region66: #{tpu_custom_call.1} parent=1 // pred_check
      _
    $region67: #{tpu_custom_call.1} parent=1 // pred_check_branch
      %594 = sbr.rel (0) target = $region69
    $region68: #{tpu_custom_call.1} parent=1 // pred_region
      %596 = vsyncadd [#allocation13], 0
      %s598 = sshll.u32 [#allocation14], 4
      %s599 = int_to_ptr.vmem [resolvable:$true] %s598
      %s600 = sshll.u32 %s11, 4
      %s601 = int_to_ptr.hbm [resolvable:$true] %s600
      %603 = dma.vmem_to_hbm [thread:$0]  %s599, 32, %s601, [#allocation13]
    $region69: #{tpu_custom_call.1} parent=1 // pred_fallthru
      _
    // Predicated region
    $region70: #{tpu_custom_call.1} parent=1 // pred_check
      _
    $region71: #{tpu_custom_call.1} parent=1 // pred_check_branch
      %605 = sbr.rel (0) target = $region73
    $region72: #{tpu_custom_call.1} parent=1 // pred_region
      %607 = dma.done [#allocation4], 256
    $region73: #{tpu_custom_call.1} parent=1 // pred_fallthru
      _
    // Predicated region
    $region74: #{tpu_custom_call.1} parent=1 // pred_check
      _
    $region75: #{tpu_custom_call.1} parent=1 // pred_check_branch
      %609 = sbr.rel (0) target = $region77
    $region76: #{tpu_custom_call.1} parent=1 // pred_region
      %611 = dma.done [#allocation13], 256
    $region77: #{tpu_custom_call.1} parent=1 // pred_fallthru
      _
    // Predicated region
    $region78: #{tpu_custom_call.1} parent=1 // pred_check
      _
    $region79: #{tpu_custom_call.1} parent=1 // pred_check_branch
      %613 = sbr.rel (0) target = $region81
    $region80: #{tpu_custom_call.1} parent=1 // pred_region
      %615 = dma.done [#allocation13], 32
    $region81: #{tpu_custom_call.1} parent=1 // pred_fallthru
      _
    %616 = vsyncpa [#allocation3], 1
    %617 = vsyncpa [#allocation6], 1
    %618 = vsyncpa [#allocation9], 1
    %619 = vsyncpa [#allocation4], 1
    %620 = vsyncpa [#allocation13], 1

</llo_original>
